<compile_context>
chip_gen: v5e
topology: v5e:2x2
jax: 0.10.0
libtpu: 0.0.40
codegen_flags: <defaults>
</compile_context>

<pallas_src>
import functools
import math

import jax
import jax.numpy as jnp
from jax.experimental import pallas as pl
from jax.experimental.pallas import tpu as pltpu


# -----------------------------------------------------------------------------
# Single fused kernel (ONE pallas_call, grid=(1,)):
#   1. Q and K projections fused into ONE lane-dense MXU push:
#        [q2d; k2d] (B*Lq+B*Lk, H) @ [w_q*scale | w_k] (H, 2F)  ->  (32, 128)
#      q-heads live in rows[:B*Lq], cols[:F]; k-heads in rows[B*Lq:], cols[F:]
#      (the two off-diagonal blocks are unused garbage — the MXU is idle-wide
#      at this N anyway).  Softmax scale is pre-folded into the q weights.
#   2. per-(head, batch) score matmuls (8 tiny 8x8 blocks, statically unrolled;
#      dot_general contracting last dims — no kh.T), but ONE batched softmax
#      over all blocks stacked sublane-major (B*nh*Lq, Lk): a single
#      max / exp / sum / reciprocal instead of 8 tiny reductions.
#   3. context blocks are never written to a lane-offset slab: they are
#      concatenated along sublanes per head and consumed directly by the
#      head-accumulated output Linear (wout repacked head-major (nh, P, H)),
#      so every store in the kernel is full-lane-width.
#   4. output Linear bias + residual add + LayerNorm(eps=1e-12) in the same body
#      (bias/gamma/beta packed into one (3, H) input -> 5 input DMAs total).
#
# NOTE: the reference PyTorch forward has `v = k.view(...)` (a bug), so the value
#       tensor actually used is the *projected k*.  We reproduce that exactly —
#       do NOT "fix" it here or the kernel diverges from the module.
#
# TODO(synk): at realistic B/L this grid=(1,) whole-problem-in-VMEM design must
# become a row-tiled grid (256-512 row tiles, lane-dense, axis marked "parallel")
# with BlockSpec double-buffering; on v7x re-derive the VMEM budget for 64 MiB
# and add a parallel axis to shard across the 2 TensorCores.  At this toy size a
# single step is fastest (launch/DMA-latency bound).
# TODO(synk): matmul operands could be cast to bf16 on v6e/v7x if the 1e-4 f32
# validation tolerance is relaxed; kept f32 here.
# -----------------------------------------------------------------------------
def _fused_mha_kernel(q_ref, k_ref, wqk_ref, wout_ref, bgb_ref, o_ref, *,
                      batch, q_len, k_len, n_heads, p_s, eps):
    f = n_heads * p_s
    n_q_rows = batch * q_len

    q2d = q_ref[...]                      # (B*Lq, H)  -- also the residual
    k2d = k_ref[...]                      # (B*Lk, H)
    bgb = bgb_ref[...]                    # (3, H): bias / gamma / beta

    # (1) Fused all-heads Q & K projection: one 128-lane-dense matmul.
    lhs = jnp.concatenate([q2d, k2d], axis=0)            # (B*Lq + B*Lk, H)
    proj = jnp.dot(lhs, wqk_ref[...], preferred_element_type=jnp.float32)

    # (2) per-(head, batch) scores; flat block index = h*B + b, matching the
    #     reference's repeat_n_heads flattening.  Statically unrolled (trip 8).
    dn = (((1,), (1,)), ((), ()))         # contract last dims directly (no kh.T)
    k_blocks = []
    score_blocks = []
    for h in range(n_heads):
        c0 = h * p_s
        for b in range(batch):
            qb = proj[b * q_len:(b + 1) * q_len, c0:c0 + p_s]            # (Lq, P)
            kb = proj[n_q_rows + b * k_len:n_q_rows + (b + 1) * k_len,
                      f + c0:f + c0 + p_s]                               # (Lk, P)
            k_blocks.append(kb)
            # softmax scale already folded into the q projection weights
            score_blocks.append(jax.lax.dot_general(
                qb, kb, dn, preferred_element_type=jnp.float32))
    # TODO(synk): attention-mask support omitted (forward uses mask=None).

    # (3) ONE batched softmax over all (h, b) row-blocks stacked along sublanes.
    scores = jnp.concatenate(score_blocks, axis=0)       # (B*nh*Lq, Lk)
    m = jnp.max(scores, axis=-1, keepdims=True)
    e = jnp.exp(scores - m)
    # approx=True would use the EUP slot but exceeds the 1e-4 f32 tolerance.
    attn = e * pl.reciprocal(jnp.sum(e, axis=-1, keepdims=True), approx=False)

    # (4) attention-weighted values (v == projected k: reference bug) fed
    #     straight into the head-accumulated output Linear; no lane-offset stores.
    y = q2d + bgb[0:1, :]                                # residual + out-bias
    for h in range(n_heads):
        ctx_rows = []
        for b in range(batch):
            idx = h * batch + b
            a = attn[idx * q_len:(idx + 1) * q_len, :]   # (Lq, Lk) sublane slice
            ctx_rows.append(jnp.dot(a, k_blocks[idx],
                                     preferred_element_type=jnp.float32))
        ctx_h = jnp.concatenate(ctx_rows, axis=0)        # (B*Lq, P)
        y = y + jnp.dot(ctx_h, wout_ref[h],              # (P, H) head slice
                        preferred_element_type=jnp.float32)
    # TODO(synk): nn.Dropout is identity in eval mode.

    # (5) LayerNorm(eps=1e-12)
    mean = jnp.mean(y, axis=-1, keepdims=True)
    var = jnp.mean(jnp.square(y - mean), axis=-1, keepdims=True)
    yn = (y - mean) * jax.lax.rsqrt(var + eps)
    o_ref[...] = yn * bgb[1:2, :] + bgb[2:3, :]


def prepare_params(params, n_heads, p_s):
    """One-time parameter repack (hoisted out of the per-call path).

    Folds the softmax scale into the q projection, concatenates the q/k
    projections head-major along lanes, repacks the output Linear head-major,
    and stacks bias/gamma/beta into a single (3, H) array.
    """
    H = params["q_proj"].shape[1]
    F = n_heads * p_s
    scale = 1.0 / math.sqrt(p_s)
    w_q = jnp.transpose(params["q_proj"], (1, 0, 2)).reshape(H, F) * scale
    # Only the first n_heads slices of k_v_proj are live (v = k.view(...) bug
    # makes the v-projection rows dead code).
    w_k = jnp.transpose(params["k_v_proj"][:n_heads], (1, 0, 2)).reshape(H, F)
    w_qk = jnp.concatenate([w_q, w_k], axis=1)                    # (H, 2F)
    wout3 = params["w_out"].T.reshape(n_heads, p_s, H)            # (nh, P, H)
    bgb = jnp.stack([params["b_out"], params["gamma"], params["beta"]], axis=0)
    return dict(w_qk=w_qk, wout3=wout3, bgb=bgb)


def multi_head_attention(q, k, v, prepped, n_heads, p_s):
    """q, k, v: (B, L, h_s) float32.  Returns (B, Lq, h_s)."""
    B, Lq, H = q.shape
    Lk = k.shape[1]
    F = n_heads * p_s
    del v  # intentionally unused: reference module's `v = k.view(...)` bug

    # Leading-dim flatten is free in XLA; the kernel works on 2-D slabs.
    q2d = q.reshape(B * Lq, H)
    k2d = k.reshape(B * Lk, H)

    out2d = pl.pallas_call(
        functools.partial(_fused_mha_kernel, batch=B, q_len=Lq, k_len=Lk,
                          n_heads=n_heads, p_s=p_s, eps=1e-12),
        out_shape=jax.ShapeDtypeStruct((B * Lq, H), jnp.float32),
        grid_spec=pltpu.PrefetchScalarGridSpec(
            num_scalar_prefetch=0,
            grid=(1,),
            in_specs=[
                pl.BlockSpec((B * Lq, H), lambda i: (0, 0)),        # q (+ residual)
                pl.BlockSpec((B * Lk, H), lambda i: (0, 0)),        # k
                pl.BlockSpec((H, 2 * F), lambda i: (0, 0)),         # packed [q|k] proj
                pl.BlockSpec((n_heads, p_s, H), lambda i: (0, 0, 0)),  # out weight
                pl.BlockSpec((3, H), lambda i: (0, 0)),             # bias/gamma/beta
            ],
            out_specs=pl.BlockSpec((B * Lq, H), lambda i: (0, 0)),
        ),
        compiler_params=pltpu.CompilerParams(dimension_semantics=("arbitrary",)),
    )(q2d, k2d, prepped["w_qk"], prepped["wout3"], prepped["bgb"])
    return out2d.reshape(B, Lq, H)


# -----------------------------------------------------------------------------
# Pure-JAX reference reproducing the PyTorch forward literally (for validation).
# -----------------------------------------------------------------------------
def reference_forward(q, k, v, params, n_heads, p_s):
    B, Lq, H = q.shape
    Lk = k.shape[1]

    def rep(x):  # repeat_n_heads
        return jnp.tile(x, (n_heads, 1, 1)).reshape(n_heads, -1, H)

    q_r, k_r, v_r = rep(q), rep(k), rep(v)
    k_v = jnp.concatenate([k_r, v_r], axis=0)
    q_p = jnp.einsum("nbh,nhp->nbp", q_r, params["q_proj"]).reshape(-1, Lq, p_s)
    kv_p = jnp.einsum("nbh,nhp->nbp", k_v, params["k_v_proj"])
    k_p, _v_p = jnp.split(kv_p, 2, axis=0)
    k_p = k_p.reshape(-1, Lk, p_s)
    v_p = k_p  # reference module's bug: v = k.view(...)
    scores = jnp.einsum("bqp,bkp->bqk", q_p, k_p) / math.sqrt(p_s)
    attn = jax.nn.softmax(scores, axis=-1)
    res = jnp.einsum("bqk,bkp->bqp", attn, v_p)
    res = jnp.concatenate(jnp.split(res, n_heads, axis=0), axis=-1)  # (B, Lq, nh*P)
    y = jnp.einsum("blf,hf->blh", res, params["w_out"]) + params["b_out"]
    y = y + q
    mean = jnp.mean(y, axis=-1, keepdims=True)
    var = jnp.mean((y - mean) ** 2, axis=-1, keepdims=True)
    return (y - mean) / jnp.sqrt(var + 1e-12) * params["gamma"] + params["beta"]


if __name__ == "__main__":
    n_heads, h_s, p_s = 4, 32, 16
    B, Lq, Lk = 2, 8, 8

    key = jax.random.PRNGKey(0)
    ks = jax.random.split(key, 8)
    q = jax.random.normal(ks[0], (B, Lq, h_s), jnp.float32)
    k = jax.random.normal(ks[1], (B, Lk, h_s), jnp.float32)
    v = jax.random.normal(ks[2], (B, Lk, h_s), jnp.float32)

    # Deterministic synthetic parameter init (kaiming-like scales, not a checkpoint load).
    std_proj = math.sqrt(2.0 / (h_s * p_s))
    std_lin = 1.0 / math.sqrt(n_heads * p_s)
    params = dict(
        q_proj=std_proj * jax.random.normal(ks[3], (n_heads, h_s, p_s), jnp.float32),
        k_v_proj=std_proj * jax.random.normal(ks[4], (2 * n_heads, h_s, p_s), jnp.float32),
        w_out=std_lin * jax.random.normal(ks[5], (h_s, n_heads * p_s), jnp.float32),
        b_out=std_lin * jax.random.normal(ks[6], (h_s,), jnp.float32),
        gamma=jnp.ones((h_s,), jnp.float32),
        beta=jnp.zeros((h_s,), jnp.float32),
    )

    # One-time weight repack (NOT in the per-call path).
    prepped = jax.tree_util.tree_map(jax.block_until_ready,
                                     prepare_params(params, n_heads, p_s))

    out = multi_head_attention(q, k, v, prepped, n_heads, p_s)
    out = jax.block_until_ready(out)

    ref = reference_forward(q, k, v, params, n_heads, p_s)
    assert out.shape == (B, Lq, h_s), out.shape
    max_err = float(jnp.max(jnp.abs(out - ref)))
    assert jnp.allclose(out, ref, rtol=1e-4, atol=1e-4), f"max abs err {max_err}"
    print("KERNEL_OK")
</pallas_src>

<mosaic_0001>
module attributes {stable_mosaic.version = 11 : i64} {
  func.func @_fused_mha_kernel(%arg0: i32, %arg1: memref<16x32xf32, #tpu.memory_space<vmem>>, %arg2: memref<16x32xf32, #tpu.memory_space<vmem>>, %arg3: memref<32x128xf32, #tpu.memory_space<vmem>>, %arg4: memref<4x16x32xf32, #tpu.memory_space<vmem>>, %arg5: memref<3x32xf32, #tpu.memory_space<vmem>>, %arg6: memref<16x32xf32, #tpu.memory_space<vmem>>) attributes {dimension_semantics = [#tpu.dimension_semantics<arbitrary>], iteration_bounds = array<i64: 1>, scalar_prefetch = 0 : i64, scratch_operands = 0 : i64, tpu.core_type = #tpu.core_type<tc>, window_params = [{pipeline_mode = #tpu.pipeline_mode<synchronous>, transform_indices = @transform_0, window_bounds = array<i64: 16, 32>}, {pipeline_mode = #tpu.pipeline_mode<synchronous>, transform_indices = @transform_1, window_bounds = array<i64: 16, 32>}, {pipeline_mode = #tpu.pipeline_mode<synchronous>, transform_indices = @transform_2, window_bounds = array<i64: 32, 128>}, {pipeline_mode = #tpu.pipeline_mode<synchronous>, transform_indices = @transform_3, window_bounds = array<i64: 4, 16, 32>}, {pipeline_mode = #tpu.pipeline_mode<synchronous>, transform_indices = @transform_4, window_bounds = array<i64: 3, 32>}, {pipeline_mode = #tpu.pipeline_mode<synchronous>, transform_indices = @transform_5, window_bounds = array<i64: 16, 32>}]} {
    %c0 = arith.constant 0 : index
    %c0_0 = arith.constant 0 : index
    %0 = vector.load %arg1[%c0, %c0_0] : memref<16x32xf32, #tpu.memory_space<vmem>>, vector<16x32xf32>
    %c0_1 = arith.constant 0 : index
    %c0_2 = arith.constant 0 : index
    %1 = vector.load %arg2[%c0_1, %c0_2] : memref<16x32xf32, #tpu.memory_space<vmem>>, vector<16x32xf32>
    %c0_3 = arith.constant 0 : index
    %c0_4 = arith.constant 0 : index
    %2 = vector.load %arg5[%c0_3, %c0_4] : memref<3x32xf32, #tpu.memory_space<vmem>>, vector<3x32xf32>
    %3 = tpu.concatenate %0, %1 in 0 : vector<16x32xf32>, vector<16x32xf32> -> vector<32x32xf32>
    %c0_5 = arith.constant 0 : index
    %c0_6 = arith.constant 0 : index
    %4 = vector.load %arg3[%c0_5, %c0_6] : memref<32x128xf32, #tpu.memory_space<vmem>>, vector<32x128xf32>
    %cst = arith.constant dense<0.000000e+00> : vector<32x128xf32>
    %5 = tpu.matmul %3, %4, %cst {dimension_numbers = #tpu.dot_dimension_numbers<[1], [0], [0], [1], [0, 0, 1, 1], [], []>} : vector<32x32xf32>, vector<32x128xf32>, vector<32x128xf32> -> vector<32x128xf32>
    %6 = vector.extract_strided_slice %5 {offsets = [0, 0], sizes = [8, 16], strides = [1, 1]} : vector<32x128xf32> to vector<8x16xf32>
    %7 = vector.extract_strided_slice %5 {offsets = [16, 64], sizes = [8, 16], strides = [1, 1]} : vector<32x128xf32> to vector<8x16xf32>
    %cst_7 = arith.constant dense<0.000000e+00> : vector<8x8xf32>
    %8 = tpu.matmul %6, %7, %cst_7 {dimension_numbers = #tpu.dot_dimension_numbers<[1], [1], [0], [0], [0, 0, 1, 0], [], []>} : vector<8x16xf32>, vector<8x16xf32>, vector<8x8xf32> -> vector<8x8xf32>
    %9 = vector.extract_strided_slice %5 {offsets = [8, 0], sizes = [8, 16], strides = [1, 1]} : vector<32x128xf32> to vector<8x16xf32>
    %10 = vector.extract_strided_slice %5 {offsets = [24, 64], sizes = [8, 16], strides = [1, 1]} : vector<32x128xf32> to vector<8x16xf32>
    %cst_8 = arith.constant dense<0.000000e+00> : vector<8x8xf32>
    %11 = tpu.matmul %9, %10, %cst_8 {dimension_numbers = #tpu.dot_dimension_numbers<[1], [1], [0], [0], [0, 0, 1, 0], [], []>} : vector<8x16xf32>, vector<8x16xf32>, vector<8x8xf32> -> vector<8x8xf32>
    %12 = vector.extract_strided_slice %5 {offsets = [0, 16], sizes = [8, 16], strides = [1, 1]} : vector<32x128xf32> to vector<8x16xf32>
    %13 = vector.extract_strided_slice %5 {offsets = [16, 80], sizes = [8, 16], strides = [1, 1]} : vector<32x128xf32> to vector<8x16xf32>
    %cst_9 = arith.constant dense<0.000000e+00> : vector<8x8xf32>
    %14 = tpu.matmul %12, %13, %cst_9 {dimension_numbers = #tpu.dot_dimension_numbers<[1], [1], [0], [0], [0, 0, 1, 0], [], []>} : vector<8x16xf32>, vector<8x16xf32>, vector<8x8xf32> -> vector<8x8xf32>
    %15 = vector.extract_strided_slice %5 {offsets = [8, 16], sizes = [8, 16], strides = [1, 1]} : vector<32x128xf32> to vector<8x16xf32>
    %16 = vector.extract_strided_slice %5 {offsets = [24, 80], sizes = [8, 16], strides = [1, 1]} : vector<32x128xf32> to vector<8x16xf32>
    %cst_10 = arith.constant dense<0.000000e+00> : vector<8x8xf32>
    %17 = tpu.matmul %15, %16, %cst_10 {dimension_numbers = #tpu.dot_dimension_numbers<[1], [1], [0], [0], [0, 0, 1, 0], [], []>} : vector<8x16xf32>, vector<8x16xf32>, vector<8x8xf32> -> vector<8x8xf32>
    %18 = vector.extract_strided_slice %5 {offsets = [0, 32], sizes = [8, 16], strides = [1, 1]} : vector<32x128xf32> to vector<8x16xf32>
    %19 = vector.extract_strided_slice %5 {offsets = [16, 96], sizes = [8, 16], strides = [1, 1]} : vector<32x128xf32> to vector<8x16xf32>
    %cst_11 = arith.constant dense<0.000000e+00> : vector<8x8xf32>
    %20 = tpu.matmul %18, %19, %cst_11 {dimension_numbers = #tpu.dot_dimension_numbers<[1], [1], [0], [0], [0, 0, 1, 0], [], []>} : vector<8x16xf32>, vector<8x16xf32>, vector<8x8xf32> -> vector<8x8xf32>
    %21 = vector.extract_strided_slice %5 {offsets = [8, 32], sizes = [8, 16], strides = [1, 1]} : vector<32x128xf32> to vector<8x16xf32>
    %22 = vector.extract_strided_slice %5 {offsets = [24, 96], sizes = [8, 16], strides = [1, 1]} : vector<32x128xf32> to vector<8x16xf32>
    %cst_12 = arith.constant dense<0.000000e+00> : vector<8x8xf32>
    %23 = tpu.matmul %21, %22, %cst_12 {dimension_numbers = #tpu.dot_dimension_numbers<[1], [1], [0], [0], [0, 0, 1, 0], [], []>} : vector<8x16xf32>, vector<8x16xf32>, vector<8x8xf32> -> vector<8x8xf32>
    %24 = vector.extract_strided_slice %5 {offsets = [0, 48], sizes = [8, 16], strides = [1, 1]} : vector<32x128xf32> to vector<8x16xf32>
    %25 = vector.extract_strided_slice %5 {offsets = [16, 112], sizes = [8, 16], strides = [1, 1]} : vector<32x128xf32> to vector<8x16xf32>
    %cst_13 = arith.constant dense<0.000000e+00> : vector<8x8xf32>
    %26 = tpu.matmul %24, %25, %cst_13 {dimension_numbers = #tpu.dot_dimension_numbers<[1], [1], [0], [0], [0, 0, 1, 0], [], []>} : vector<8x16xf32>, vector<8x16xf32>, vector<8x8xf32> -> vector<8x8xf32>
    %27 = vector.extract_strided_slice %5 {offsets = [8, 48], sizes = [8, 16], strides = [1, 1]} : vector<32x128xf32> to vector<8x16xf32>
    %28 = vector.extract_strided_slice %5 {offsets = [24, 112], sizes = [8, 16], strides = [1, 1]} : vector<32x128xf32> to vector<8x16xf32>
    %cst_14 = arith.constant dense<0.000000e+00> : vector<8x8xf32>
    %29 = tpu.matmul %27, %28, %cst_14 {dimension_numbers = #tpu.dot_dimension_numbers<[1], [1], [0], [0], [0, 0, 1, 0], [], []>} : vector<8x16xf32>, vector<8x16xf32>, vector<8x8xf32> -> vector<8x8xf32>
    %30 = tpu.concatenate %8, %11, %14, %17, %20, %23, %26, %29 in 0 : vector<8x8xf32>, vector<8x8xf32>, vector<8x8xf32>, vector<8x8xf32>, vector<8x8xf32>, vector<8x8xf32>, vector<8x8xf32>, vector<8x8xf32> -> vector<64x8xf32>
    %cst_15 = arith.constant dense<0xFF800000> : vector<64xf32>
    %31 = vector.multi_reduction <maximumf>, %30, %cst_15 [1] : vector<64x8xf32> to vector<64xf32>
    %32 = vector.shape_cast %31 : vector<64xf32> to vector<64x1xf32>
    %33 = vector.broadcast %32 : vector<64x1xf32> to vector<64x8xf32>
    %34 = arith.subf %30, %33 : vector<64x8xf32>
    %35 = math.exp %34 : vector<64x8xf32>
    %cst_16 = arith.constant dense<0.000000e+00> : vector<64xf32>
    %36 = vector.multi_reduction <add>, %35, %cst_16 [1] : vector<64x8xf32> to vector<64xf32>
    %37 = vector.shape_cast %36 : vector<64xf32> to vector<64x1xf32>
    %38 = tpu.reciprocal %37 : vector<64x1xf32> -> vector<64x1xf32>
    %39 = vector.broadcast %38 : vector<64x1xf32> to vector<64x8xf32>
    %40 = arith.mulf %35, %39 : vector<64x8xf32>
    %41 = vector.extract_strided_slice %2 {offsets = [0, 0], sizes = [1, 32], strides = [1, 1]} : vector<3x32xf32> to vector<1x32xf32>
    %42 = vector.broadcast %41 : vector<1x32xf32> to vector<16x32xf32>
    %43 = arith.addf %0, %42 : vector<16x32xf32>
    %44 = vector.extract_strided_slice %40 {offsets = [0, 0], sizes = [8, 8], strides = [1, 1]} : vector<64x8xf32> to vector<8x8xf32>
    %cst_17 = arith.constant dense<0.000000e+00> : vector<8x16xf32>
    %45 = tpu.matmul %44, %7, %cst_17 {dimension_numbers = #tpu.dot_dimension_numbers<[1], [0], [0], [1], [0, 0, 1, 1], [], []>} : vector<8x8xf32>, vector<8x16xf32>, vector<8x16xf32> -> vector<8x16xf32>
    %46 = vector.extract_strided_slice %40 {offsets = [8, 0], sizes = [8, 8], strides = [1, 1]} : vector<64x8xf32> to vector<8x8xf32>
    %cst_18 = arith.constant dense<0.000000e+00> : vector<8x16xf32>
    %47 = tpu.matmul %46, %10, %cst_18 {dimension_numbers = #tpu.dot_dimension_numbers<[1], [0], [0], [1], [0, 0, 1, 1], [], []>} : vector<8x8xf32>, vector<8x16xf32>, vector<8x16xf32> -> vector<8x16xf32>
    %48 = tpu.concatenate %45, %47 in 0 : vector<8x16xf32>, vector<8x16xf32> -> vector<16x16xf32>
    %c0_19 = arith.constant 0 : index
    %c0_20 = arith.constant 0 : index
    %c0_21 = arith.constant 0 : index
    %49 = vector.load %arg4[%c0_19, %c0_20, %c0_21] : memref<4x16x32xf32, #tpu.memory_space<vmem>>, vector<1x16x32xf32>
    %50 = vector.shape_cast %49 : vector<1x16x32xf32> to vector<16x32xf32>
    %cst_22 = arith.constant dense<0.000000e+00> : vector<16x32xf32>
    %51 = tpu.matmul %48, %50, %cst_22 {dimension_numbers = #tpu.dot_dimension_numbers<[1], [0], [0], [1], [0, 0, 1, 1], [], []>} : vector<16x16xf32>, vector<16x32xf32>, vector<16x32xf32> -> vector<16x32xf32>
    %52 = arith.addf %43, %51 : vector<16x32xf32>
    %53 = vector.extract_strided_slice %40 {offsets = [16, 0], sizes = [8, 8], strides = [1, 1]} : vector<64x8xf32> to vector<8x8xf32>
    %cst_23 = arith.constant dense<0.000000e+00> : vector<8x16xf32>
    %54 = tpu.matmul %53, %13, %cst_23 {dimension_numbers = #tpu.dot_dimension_numbers<[1], [0], [0], [1], [0, 0, 1, 1], [], []>} : vector<8x8xf32>, vector<8x16xf32>, vector<8x16xf32> -> vector<8x16xf32>
    %55 = vector.extract_strided_slice %40 {offsets = [24, 0], sizes = [8, 8], strides = [1, 1]} : vector<64x8xf32> to vector<8x8xf32>
    %cst_24 = arith.constant dense<0.000000e+00> : vector<8x16xf32>
    %56 = tpu.matmul %55, %16, %cst_24 {dimension_numbers = #tpu.dot_dimension_numbers<[1], [0], [0], [1], [0, 0, 1, 1], [], []>} : vector<8x8xf32>, vector<8x16xf32>, vector<8x16xf32> -> vector<8x16xf32>
    %57 = tpu.concatenate %54, %56 in 0 : vector<8x16xf32>, vector<8x16xf32> -> vector<16x16xf32>
    %c1 = arith.constant 1 : index
    %c0_25 = arith.constant 0 : index
    %c0_26 = arith.constant 0 : index
    %58 = vector.load %arg4[%c1, %c0_25, %c0_26] : memref<4x16x32xf32, #tpu.memory_space<vmem>>, vector<1x16x32xf32>
    %59 = vector.shape_cast %58 : vector<1x16x32xf32> to vector<16x32xf32>
    %cst_27 = arith.constant dense<0.000000e+00> : vector<16x32xf32>
    %60 = tpu.matmul %57, %59, %cst_27 {dimension_numbers = #tpu.dot_dimension_numbers<[1], [0], [0], [1], [0, 0, 1, 1], [], []>} : vector<16x16xf32>, vector<16x32xf32>, vector<16x32xf32> -> vector<16x32xf32>
    %61 = arith.addf %52, %60 : vector<16x32xf32>
    %62 = vector.extract_strided_slice %40 {offsets = [32, 0], sizes = [8, 8], strides = [1, 1]} : vector<64x8xf32> to vector<8x8xf32>
    %cst_28 = arith.constant dense<0.000000e+00> : vector<8x16xf32>
    %63 = tpu.matmul %62, %19, %cst_28 {dimension_numbers = #tpu.dot_dimension_numbers<[1], [0], [0], [1], [0, 0, 1, 1], [], []>} : vector<8x8xf32>, vector<8x16xf32>, vector<8x16xf32> -> vector<8x16xf32>
    %64 = vector.extract_strided_slice %40 {offsets = [40, 0], sizes = [8, 8], strides = [1, 1]} : vector<64x8xf32> to vector<8x8xf32>
    %cst_29 = arith.constant dense<0.000000e+00> : vector<8x16xf32>
    %65 = tpu.matmul %64, %22, %cst_29 {dimension_numbers = #tpu.dot_dimension_numbers<[1], [0], [0], [1], [0, 0, 1, 1], [], []>} : vector<8x8xf32>, vector<8x16xf32>, vector<8x16xf32> -> vector<8x16xf32>
    %66 = tpu.concatenate %63, %65 in 0 : vector<8x16xf32>, vector<8x16xf32> -> vector<16x16xf32>
    %c2 = arith.constant 2 : index
    %c0_30 = arith.constant 0 : index
    %c0_31 = arith.constant 0 : index
    %67 = vector.load %arg4[%c2, %c0_30, %c0_31] : memref<4x16x32xf32, #tpu.memory_space<vmem>>, vector<1x16x32xf32>
    %68 = vector.shape_cast %67 : vector<1x16x32xf32> to vector<16x32xf32>
    %cst_32 = arith.constant dense<0.000000e+00> : vector<16x32xf32>
    %69 = tpu.matmul %66, %68, %cst_32 {dimension_numbers = #tpu.dot_dimension_numbers<[1], [0], [0], [1], [0, 0, 1, 1], [], []>} : vector<16x16xf32>, vector<16x32xf32>, vector<16x32xf32> -> vector<16x32xf32>
    %70 = arith.addf %61, %69 : vector<16x32xf32>
    %71 = vector.extract_strided_slice %40 {offsets = [48, 0], sizes = [8, 8], strides = [1, 1]} : vector<64x8xf32> to vector<8x8xf32>
    %cst_33 = arith.constant dense<0.000000e+00> : vector<8x16xf32>
    %72 = tpu.matmul %71, %25, %cst_33 {dimension_numbers = #tpu.dot_dimension_numbers<[1], [0], [0], [1], [0, 0, 1, 1], [], []>} : vector<8x8xf32>, vector<8x16xf32>, vector<8x16xf32> -> vector<8x16xf32>
    %73 = vector.extract_strided_slice %40 {offsets = [56, 0], sizes = [8, 8], strides = [1, 1]} : vector<64x8xf32> to vector<8x8xf32>
    %cst_34 = arith.constant dense<0.000000e+00> : vector<8x16xf32>
    %74 = tpu.matmul %73, %28, %cst_34 {dimension_numbers = #tpu.dot_dimension_numbers<[1], [0], [0], [1], [0, 0, 1, 1], [], []>} : vector<8x8xf32>, vector<8x16xf32>, vector<8x16xf32> -> vector<8x16xf32>
    %75 = tpu.concatenate %72, %74 in 0 : vector<8x16xf32>, vector<8x16xf32> -> vector<16x16xf32>
    %c3 = arith.constant 3 : index
    %c0_35 = arith.constant 0 : index
    %c0_36 = arith.constant 0 : index
    %76 = vector.load %arg4[%c3, %c0_35, %c0_36] : memref<4x16x32xf32, #tpu.memory_space<vmem>>, vector<1x16x32xf32>
    %77 = vector.shape_cast %76 : vector<1x16x32xf32> to vector<16x32xf32>
    %cst_37 = arith.constant dense<0.000000e+00> : vector<16x32xf32>
    %78 = tpu.matmul %75, %77, %cst_37 {dimension_numbers = #tpu.dot_dimension_numbers<[1], [0], [0], [1], [0, 0, 1, 1], [], []>} : vector<16x16xf32>, vector<16x32xf32>, vector<16x32xf32> -> vector<16x32xf32>
    %79 = arith.addf %70, %78 : vector<16x32xf32>
    %cst_38 = arith.constant dense<0.000000e+00> : vector<16xf32>
    %80 = vector.multi_reduction <add>, %79, %cst_38 [1] : vector<16x32xf32> to vector<16xf32>
    %81 = vector.shape_cast %80 : vector<16xf32> to vector<16x1xf32>
    %cst_39 = arith.constant 3.200000e+01 : f32
    %82 = vector.broadcast %cst_39 : f32 to vector<16x1xf32>
    %83 = arith.divf %81, %82 : vector<16x1xf32>
    %84 = vector.broadcast %83 : vector<16x1xf32> to vector<16x32xf32>
    %85 = arith.subf %79, %84 : vector<16x32xf32>
    %86 = arith.mulf %85, %85 : vector<16x32xf32>
    %cst_40 = arith.constant dense<0.000000e+00> : vector<16xf32>
    %87 = vector.multi_reduction <add>, %86, %cst_40 [1] : vector<16x32xf32> to vector<16xf32>
    %88 = vector.shape_cast %87 : vector<16xf32> to vector<16x1xf32>
    %cst_41 = arith.constant 3.200000e+01 : f32
    %89 = vector.broadcast %cst_41 : f32 to vector<16x1xf32>
    %90 = arith.divf %88, %89 : vector<16x1xf32>
    %91 = vector.broadcast %83 : vector<16x1xf32> to vector<16x32xf32>
    %92 = arith.subf %79, %91 : vector<16x32xf32>
    %cst_42 = arith.constant 9.99999996E-13 : f32
    %93 = vector.broadcast %cst_42 : f32 to vector<16x1xf32>
    %94 = arith.addf %90, %93 : vector<16x1xf32>
    %95 = math.rsqrt %94 : vector<16x1xf32>
    %96 = vector.broadcast %95 : vector<16x1xf32> to vector<16x32xf32>
    %97 = arith.mulf %92, %96 : vector<16x32xf32>
    %98 = vector.extract_strided_slice %2 {offsets = [1, 0], sizes = [1, 32], strides = [1, 1]} : vector<3x32xf32> to vector<1x32xf32>
    %99 = vector.broadcast %98 : vector<1x32xf32> to vector<16x32xf32>
    %100 = arith.mulf %97, %99 : vector<16x32xf32>
    %101 = vector.extract_strided_slice %2 {offsets = [2, 0], sizes = [1, 32], strides = [1, 1]} : vector<3x32xf32> to vector<1x32xf32>
    %102 = vector.broadcast %101 : vector<1x32xf32> to vector<16x32xf32>
    %103 = arith.addf %100, %102 : vector<16x32xf32>
    %c0_43 = arith.constant 0 : index
    %c0_44 = arith.constant 0 : index
    %104 = vector.load %arg6[%c0_43, %c0_44] : memref<16x32xf32, #tpu.memory_space<vmem>>, vector<16x32xf32>
    tpu.vector_store %arg6[%c0_43, %c0_44], %103 {strides = array<i32>} : memref<16x32xf32, #tpu.memory_space<vmem>>, vector<16x32xf32>,
    return
  }
  func.func @transform_0(%arg0: i32) -> (i32, i32) {
    %c0_i32 = arith.constant 0 : i32
    %c0_i32_0 = arith.constant 0 : i32
    %c0_i32_1 = arith.constant 0 : i32
    return %c0_i32, %c0_i32_0 : i32, i32
  }
  func.func @transform_1(%arg0: i32) -> (i32, i32) {
    %c0_i32 = arith.constant 0 : i32
    %c0_i32_0 = arith.constant 0 : i32
    %c0_i32_1 = arith.constant 0 : i32
    return %c0_i32, %c0_i32_0 : i32, i32
  }
  func.func @transform_2(%arg0: i32) -> (i32, i32) {
    %c0_i32 = arith.constant 0 : i32
    %c0_i32_0 = arith.constant 0 : i32
    %c0_i32_1 = arith.constant 0 : i32
    return %c0_i32, %c0_i32_0 : i32, i32
  }
  func.func @transform_3(%arg0: i32) -> (i32, i32, i32) {
    %c0_i32 = arith.constant 0 : i32
    %c0_i32_0 = arith.constant 0 : i32
    %c0_i32_1 = arith.constant 0 : i32
    %c0_i32_2 = arith.constant 0 : i32
    return %c0_i32, %c0_i32_0, %c0_i32_1 : i32, i32, i32
  }
  func.func @transform_4(%arg0: i32) -> (i32, i32) {
    %c0_i32 = arith.constant 0 : i32
    %c0_i32_0 = arith.constant 0 : i32
    %c0_i32_1 = arith.constant 0 : i32
    return %c0_i32, %c0_i32_0 : i32, i32
  }
  func.func @transform_5(%arg0: i32) -> (i32, i32) {
    %c0_i32 = arith.constant 0 : i32
    %c0_i32_0 = arith.constant 0 : i32
    %c0_i32_1 = arith.constant 0 : i32
    return %c0_i32, %c0_i32_0 : i32, i32
  }
}

</mosaic_0001>

<llo_original>
// kernel: tpu_custom_call.1
$region0: #{tpu_custom_call.1}
  #allocation0 [shape = 'u32[]', space=smem, size = 0x4, offset = 0x4, fixed_abs, tag = 'smem constant byte address 0x4 - core index']
  #allocation1 [shape = 'u32[72,128]{1,0:T(1,128)}', space=vmem, size = 0x9000, scoped, tag = 'internal scratch']
  %s0 = inlined_call_operand.hbm [shape: f32[16,32], index: 0, kind: input, shape index: {}]
  %s1 = inlined_call_operand.hbm [shape: f32[16,32], index: 1, kind: input, shape index: {}]
  %s2 = inlined_call_operand.hbm [shape: f32[32,128], index: 2, kind: input, shape index: {}]
  %s3 = inlined_call_operand.hbm [shape: f32[4,16,32], index: 3, kind: input, shape index: {}]
  %s4 = inlined_call_operand.hbm [shape: f32[3,32], index: 4, kind: input, shape index: {}]
  %s5 = inlined_call_operand.hbm [shape: f32[16,32], index: 5, kind: output, shape index: {}]
  %s6 = sld [smem:[#allocation0]]
  $region50: #{tpu_custom_call.1} parent=0
    _
  %s8 = ssub.s32 1, %s6
  %s9 = scalar_select 0, %s8, %s6
  $region1: #{tpu_custom_call.1} parent=0
    #allocation2 [shape = 'u8[8192]{0}', space=vmem, size = 0x2000, scoped, tag = 'input window, operand 0, single buffered']
    #allocation3 [shape = 's32[1]{0}', space=sflag, size = 0x4, scoped, tag = 'scoped memory for tpu_custom_call.1']
    #allocation4 [shape = 's32[1]{0}', space=sflag, size = 0x4, scoped, tag = 'scoped memory for tpu_custom_call.1']
    #allocation5 [shape = 'u8[8192]{0}', space=vmem, size = 0x2000, scoped, tag = 'input window, operand 1, single buffered']
    #allocation6 [shape = 's32[1]{0}', space=sflag, size = 0x4, scoped, tag = 'scoped memory for tpu_custom_call.1']
    #allocation7 [shape = 'u8[16384]{0}', space=vmem, size = 0x4000, scoped, tag = 'input window, operand 2, single buffered']
    #allocation8 [shape = 'u8[32768]{0}', space=vmem, size = 0x8000, scoped, tag = 'input window, operand 3, single buffered']
    #allocation9 [shape = 's32[1]{0}', space=sflag, size = 0x4, scoped, tag = 'scoped memory for tpu_custom_call.1']
    #allocation10 [shape = 'u8[2048]{0}', space=vmem, size = 0x800, scoped, tag = 'input window, operand 4, single buffered']
    #allocation11 [shape = 'u8[8192]{0}', space=vmem, size = 0x2000, scoped, tag = 'output window, operand 0, single buffered']
    %10 = vsyncpa [#allocation3], 0
    %11 = vsyncpa [#allocation6], 0
    %12 = vsyncpa [#allocation9], 0
    %13 = vsyncpa [#allocation4], 0
    // Predicated region
    $region2: #{tpu_custom_call.1} parent=1 // pred_check
      _
    $region3: #{tpu_custom_call.1} parent=1 // pred_check_branch
      %15 = sbr.rel (0) target = $region5
    $region4: #{tpu_custom_call.1} parent=1 // pred_region
      %17 = vsyncadd [#allocation3], 0
      %s18 = sshll.u32 %s0, 4
      %s19 = int_to_ptr.hbm [resolvable:$true] %s18
      %s20 = sshll.u32 [#allocation2], 4
      %s21 = int_to_ptr.vmem [resolvable:$true] %s20
      %26 = dma.hbm_to_vmem [thread:$0]  %s19, 256, %s21, [#allocation3], 128, 128, 8
    $region5: #{tpu_custom_call.1} parent=1 // pred_fallthru
      _
    // Predicated region
    $region6: #{tpu_custom_call.1} parent=1 // pred_check
      _
    $region7: #{tpu_custom_call.1} parent=1 // pred_check_branch
      %28 = sbr.rel (0) target = $region9
    $region8: #{tpu_custom_call.1} parent=1 // pred_region
      %30 = vsyncadd [#allocation6], 0
      %s31 = sshll.u32 %s1, 4
      %s32 = int_to_ptr.hbm [resolvable:$true] %s31
      %s33 = sshll.u32 [#allocation5], 4
      %s34 = int_to_ptr.vmem [resolvable:$true] %s33
      %39 = dma.hbm_to_vmem [thread:$0]  %s32, 256, %s34, [#allocation6], 128, 128, 8
    $region9: #{tpu_custom_call.1} parent=1 // pred_fallthru
      _
    // Predicated region
    $region10: #{tpu_custom_call.1} parent=1 // pred_check
      _
    $region11: #{tpu_custom_call.1} parent=1 // pred_check_branch
      %41 = sbr.rel (0) target = $region13
    $region12: #{tpu_custom_call.1} parent=1 // pred_region
      %43 = vsyncadd [#allocation6], 0
      %s44 = sshll.u32 %s2, 4
      %s45 = int_to_ptr.hbm [resolvable:$true] %s44
      %s46 = sshll.u32 [#allocation7], 4
      %s47 = int_to_ptr.vmem [resolvable:$true] %s46
      %52 = dma.hbm_to_vmem [thread:$0]  %s45, 512, %s47, [#allocation6], 128, 128, 8
    $region13: #{tpu_custom_call.1} parent=1 // pred_fallthru
      _
    // Predicated region
    $region14: #{tpu_custom_call.1} parent=1 // pred_check
      _
    $region15: #{tpu_custom_call.1} parent=1 // pred_check_branch
      %54 = sbr.rel (0) target = $region17
    $region16: #{tpu_custom_call.1} parent=1 // pred_region
      %56 = vsyncadd [#allocation9], 0
      %s57 = sshll.u32 %s3, 4
      %s58 = int_to_ptr.hbm [resolvable:$true] %s57
      %s59 = sshll.u32 [#allocation8], 4
      %s60 = int_to_ptr.vmem [resolvable:$true] %s59
      %65 = dma.hbm_to_vmem [thread:$0]  %s58, 1024, %s60, [#allocation9], 128, 128, 8
    $region17: #{tpu_custom_call.1} parent=1 // pred_fallthru
      _
    // Predicated region
    $region18: #{tpu_custom_call.1} parent=1 // pred_check
      _
    $region19: #{tpu_custom_call.1} parent=1 // pred_check_branch
      %67 = sbr.rel (0) target = $region21
    $region20: #{tpu_custom_call.1} parent=1 // pred_region
      %69 = vsyncadd [#allocation9], 0
      %s71 = sshll.u32 %s4, 4
      %s72 = int_to_ptr.hbm [resolvable:$true] %s71
      %s73 = sshll.u32 [#allocation10], 4
      %s74 = int_to_ptr.vmem [resolvable:$true] %s73
      %76 = dma.hbm_to_vmem [thread:$0]  %s72, 64, %s74, [#allocation9]
    $region21: #{tpu_custom_call.1} parent=1 // pred_fallthru
      _
    // Predicated region
    $region22: #{tpu_custom_call.1} parent=1 // pred_check
      _
    $region23: #{tpu_custom_call.1} parent=1 // pred_check_branch
      %78 = sbr.rel (0) target = $region25
    $region24: #{tpu_custom_call.1} parent=1 // pred_region
      %80 = dma.done [#allocation3], 256
    $region25: #{tpu_custom_call.1} parent=1 // pred_fallthru
      _
    // Predicated region
    $region26: #{tpu_custom_call.1} parent=1 // pred_check
      _
    $region27: #{tpu_custom_call.1} parent=1 // pred_check_branch
      %82 = sbr.rel (0) target = $region29
    $region28: #{tpu_custom_call.1} parent=1 // pred_region
      %84 = dma.done [#allocation6], 256
    $region29: #{tpu_custom_call.1} parent=1 // pred_fallthru
      _
    // Predicated region
    $region30: #{tpu_custom_call.1} parent=1 // pred_check
      _
    $region31: #{tpu_custom_call.1} parent=1 // pred_check_branch
      %86 = sbr.rel (0) target = $region33
    $region32: #{tpu_custom_call.1} parent=1 // pred_region
      %88 = dma.done [#allocation6], 512
    $region33: #{tpu_custom_call.1} parent=1 // pred_fallthru
      _
    // Predicated region
    $region34: #{tpu_custom_call.1} parent=1 // pred_check
      _
    $region35: #{tpu_custom_call.1} parent=1 // pred_check_branch
      %90 = sbr.rel (0) target = $region37
    $region36: #{tpu_custom_call.1} parent=1 // pred_region
      %92 = dma.done [#allocation9], 1024
    $region37: #{tpu_custom_call.1} parent=1 // pred_fallthru
      _
    // Predicated region
    $region38: #{tpu_custom_call.1} parent=1 // pred_check
      _
    $region39: #{tpu_custom_call.1} parent=1 // pred_check_branch
      %94 = sbr.rel (0) target = $region41
    $region40: #{tpu_custom_call.1} parent=1 // pred_region
      %96 = dma.done [#allocation9], 64
    $region41: #{tpu_custom_call.1} parent=1 // pred_fallthru
      _
    %v97 = vld [vmem:[#allocation2] sm:$0xff]
    %v98 = vld [vmem:[#allocation2 + $0x8] sm:$0xff]
    %v99 = vld [vmem:[#allocation5] sm:$0xff]
    %v100 = vld [vmem:[#allocation5 + $0x8] sm:$0xff]
    %v101 = vld [vmem:[#allocation10] sm:$0x7]
    %v102 = vld [vmem:[#allocation7] sm:$0xff]
    %v103 = vld [vmem:[#allocation7 + $0x8] sm:$0xff]
    %v104 = vld [vmem:[#allocation7 + $0x10] sm:$0xff]
    %v105 = vld [vmem:[#allocation7 + $0x18] sm:$0xff]
    %vm106 = vcmask 261120
    %v108 = vsel %vm106, %v97, 0
    %v111 = vsel %vm106, %v98, 0
    %v114 = vsel %vm106, %v99, 0
    %v117 = vsel %vm106, %v100, 0
    %119 = vmatpush.msra.mxu0 0.0
    %120 = vmatpush.msra.mxu0 0.0
    %121 = vmatpush.msra.mxu0 0.0
    %122 = vmatpush.msra.mxu0 0.0
    %123 = vmatpush.msra.mxu0 0.0
    %124 = vmatpush.msra.mxu0 0.0
    %125 = vmatpush.msra.mxu0 0.0
    %126 = vmatpush.msra.mxu0 0.0
    %127 = vmatpush.msra.mxu0 0.0
    %128 = vmatpush.msra.mxu0 0.0
    %129 = vmatpush.msra.mxu0 0.0
    %130 = vmatpush.msra.mxu0 0.0
    %131 = vmatpush.msra.mxu0 %v105
    %132 = vmatpush.msra.mxu0 %v104
    %133 = vmatpush.msra.mxu0 %v103
    %134 = vmatpush.msra.mxu0 %v102
    %135 = vmatmul.f32.gmra.mxu0 %v108
    %v136 = vpop.f32.mrf.mxu0
    %v137 = vadd.f32 0.0, %v136
    %138 = vmatmul.f32.gmra.mxu0 %v111
    %v139 = vpop.f32.mrf.mxu0
    %v140 = vadd.f32 0.0, %v139
    %141 = vmatmul.f32.gmra.mxu0 %v114
    %v142 = vpop.f32.mrf.mxu0
    %v143 = vadd.f32 0.0, %v142
    %144 = vmatmul.f32.gmra.mxu0 %v117
    %v145 = vpop.f32.mrf.mxu0
    %v146 = vadd.f32 0.0, %v145
    %147 = vdwg.mxu0
    %149 = vrot.lane.b32.xlu0 %v143, 64
    %v150 = vpop.permute.xlu0 %149
    %vm151 = vcmask 130048
    %v153 = vsel %vm151, %v137, 0
    %v155 = vsel %vm151, %v150, 0
    %157 = vmatpush.xpose.msra.mxu0 0.0
    %158 = vmatpush.xpose.msra.mxu0 0.0
    %159 = vmatpush.xpose.msra.mxu0 0.0
    %160 = vmatpush.xpose.msra.mxu0 0.0
    %161 = vmatpush.xpose.msra.mxu0 0.0
    %162 = vmatpush.xpose.msra.mxu0 0.0
    %163 = vmatpush.xpose.msra.mxu0 0.0
    %164 = vmatpush.xpose.msra.mxu0 0.0
    %165 = vmatpush.xpose.msra.mxu0 0.0
    %166 = vmatpush.xpose.msra.mxu0 0.0
    %167 = vmatpush.xpose.msra.mxu0 0.0
    %168 = vmatpush.xpose.msra.mxu0 0.0
    %169 = vmatpush.xpose.msra.mxu0 0.0
    %170 = vmatpush.xpose.msra.mxu0 0.0
    %171 = vmatpush.xpose.msra.mxu0 0.0
    %172 = vmatpush.xpose.msra.mxu0 %v155
    %173 = vmatmul.f32.gmra.mxu0 %v153
    %v174 = vpop.f32.mrf.mxu0
    %v175 = vadd.f32 0.0, %v174
    %176 = vdwg.mxu0
    %178 = vrot.lane.b32.xlu0 %v146, 64
    %v179 = vpop.permute.xlu0 %178
    %v181 = vsel %vm151, %v140, 0
    %v183 = vsel %vm151, %v179, 0
    %185 = vmatpush.xpose.msra.mxu0 0.0
    %186 = vmatpush.xpose.msra.mxu0 0.0
    %187 = vmatpush.xpose.msra.mxu0 0.0
    %188 = vmatpush.xpose.msra.mxu0 0.0
    %189 = vmatpush.xpose.msra.mxu0 0.0
    %190 = vmatpush.xpose.msra.mxu0 0.0
    %191 = vmatpush.xpose.msra.mxu0 0.0
    %192 = vmatpush.xpose.msra.mxu0 0.0
    %193 = vmatpush.xpose.msra.mxu0 0.0
    %194 = vmatpush.xpose.msra.mxu0 0.0
    %195 = vmatpush.xpose.msra.mxu0 0.0
    %196 = vmatpush.xpose.msra.mxu0 0.0
    %197 = vmatpush.xpose.msra.mxu0 0.0
    %198 = vmatpush.xpose.msra.mxu0 0.0
    %199 = vmatpush.xpose.msra.mxu0 0.0
    %200 = vmatpush.xpose.msra.mxu0 %v183
    %201 = vmatmul.f32.gmra.mxu0 %v181
    %v202 = vpop.f32.mrf.mxu0
    %v203 = vadd.f32 0.0, %v202
    %204 = vdwg.mxu0
    %205 = vrot.lane.b32.xlu0 %v137, 112
    %v206 = vpop.permute.xlu0 %205
    %207 = vrot.lane.b32.xlu0 %v143, 48
    %v208 = vpop.permute.xlu0 %207
    %v209 = vsel %vm151, %v206, 0
    %v211 = vsel %vm151, %v208, 0
    %213 = vmatpush.xpose.msra.mxu0 0.0
    %214 = vmatpush.xpose.msra.mxu0 0.0
    %215 = vmatpush.xpose.msra.mxu0 0.0
    %216 = vmatpush.xpose.msra.mxu0 0.0
    %217 = vmatpush.xpose.msra.mxu0 0.0
    %218 = vmatpush.xpose.msra.mxu0 0.0
    %219 = vmatpush.xpose.msra.mxu0 0.0
    %220 = vmatpush.xpose.msra.mxu0 0.0
    %221 = vmatpush.xpose.msra.mxu0 0.0
    %222 = vmatpush.xpose.msra.mxu0 0.0
    %223 = vmatpush.xpose.msra.mxu0 0.0
    %224 = vmatpush.xpose.msra.mxu0 0.0
    %225 = vmatpush.xpose.msra.mxu0 0.0
    %226 = vmatpush.xpose.msra.mxu0 0.0
    %227 = vmatpush.xpose.msra.mxu0 0.0
    %228 = vmatpush.xpose.msra.mxu0 %v211
    %229 = vmatmul.f32.gmra.mxu0 %v209
    %v230 = vpop.f32.mrf.mxu0
    %v231 = vadd.f32 0.0, %v230
    %232 = vdwg.mxu0
    %233 = vrot.lane.b32.xlu0 %v140, 112
    %v234 = vpop.permute.xlu0 %233
    %235 = vrot.lane.b32.xlu0 %v146, 48
    %v236 = vpop.permute.xlu0 %235
    %v237 = vsel %vm151, %v234, 0
    %v239 = vsel %vm151, %v236, 0
    %241 = vmatpush.xpose.msra.mxu0 0.0
    %242 = vmatpush.xpose.msra.mxu0 0.0
    %243 = vmatpush.xpose.msra.mxu0 0.0
    %244 = vmatpush.xpose.msra.mxu0 0.0
    %245 = vmatpush.xpose.msra.mxu0 0.0
    %246 = vmatpush.xpose.msra.mxu0 0.0
    %247 = vmatpush.xpose.msra.mxu0 0.0
    %248 = vmatpush.xpose.msra.mxu0 0.0
    %249 = vmatpush.xpose.msra.mxu0 0.0
    %250 = vmatpush.xpose.msra.mxu0 0.0
    %251 = vmatpush.xpose.msra.mxu0 0.0
    %252 = vmatpush.xpose.msra.mxu0 0.0
    %253 = vmatpush.xpose.msra.mxu0 0.0
    %254 = vmatpush.xpose.msra.mxu0 0.0
    %255 = vmatpush.xpose.msra.mxu0 0.0
    %256 = vmatpush.xpose.msra.mxu0 %v239
    %257 = vmatmul.f32.gmra.mxu0 %v237
    %v258 = vpop.f32.mrf.mxu0
    %v259 = vadd.f32 0.0, %v258
    %260 = vdwg.mxu0
    %261 = vrot.lane.b32.xlu0 %v137, 96
    %v262 = vpop.permute.xlu0 %261
    %263 = vrot.lane.b32.xlu0 %v143, 32
    %v264 = vpop.permute.xlu0 %263
    %v265 = vsel %vm151, %v262, 0
    %v267 = vsel %vm151, %v264, 0
    %269 = vmatpush.xpose.msra.mxu0 0.0
    %270 = vmatpush.xpose.msra.mxu0 0.0
    %271 = vmatpush.xpose.msra.mxu0 0.0
    %272 = vmatpush.xpose.msra.mxu0 0.0
    %273 = vmatpush.xpose.msra.mxu0 0.0
    %274 = vmatpush.xpose.msra.mxu0 0.0
    %275 = vmatpush.xpose.msra.mxu0 0.0
    %276 = vmatpush.xpose.msra.mxu0 0.0
    %277 = vmatpush.xpose.msra.mxu0 0.0
    %278 = vmatpush.xpose.msra.mxu0 0.0
    %279 = vmatpush.xpose.msra.mxu0 0.0
    %280 = vmatpush.xpose.msra.mxu0 0.0
    %281 = vmatpush.xpose.msra.mxu0 0.0
    %282 = vmatpush.xpose.msra.mxu0 0.0
    %283 = vmatpush.xpose.msra.mxu0 0.0
    %284 = vmatpush.xpose.msra.mxu0 %v267
    %285 = vmatmul.f32.gmra.mxu0 %v265
    %v286 = vpop.f32.mrf.mxu0
    %v287 = vadd.f32 0.0, %v286
    %288 = vdwg.mxu0
    %289 = vrot.lane.b32.xlu0 %v140, 96
    %v290 = vpop.permute.xlu0 %289
    %291 = vrot.lane.b32.xlu0 %v146, 32
    %v292 = vpop.permute.xlu0 %291
    %v293 = vsel %vm151, %v290, 0
    %v295 = vsel %vm151, %v292, 0
    %297 = vmatpush.xpose.msra.mxu0 0.0
    %298 = vmatpush.xpose.msra.mxu0 0.0
    %299 = vmatpush.xpose.msra.mxu0 0.0
    %300 = vmatpush.xpose.msra.mxu0 0.0
    %301 = vmatpush.xpose.msra.mxu0 0.0
    %302 = vmatpush.xpose.msra.mxu0 0.0
    %303 = vmatpush.xpose.msra.mxu0 0.0
    %304 = vmatpush.xpose.msra.mxu0 0.0
    %305 = vmatpush.xpose.msra.mxu0 0.0
    %306 = vmatpush.xpose.msra.mxu0 0.0
    %307 = vmatpush.xpose.msra.mxu0 0.0
    %308 = vmatpush.xpose.msra.mxu0 0.0
    %309 = vmatpush.xpose.msra.mxu0 0.0
    %310 = vmatpush.xpose.msra.mxu0 0.0
    %311 = vmatpush.xpose.msra.mxu0 0.0
    %312 = vmatpush.xpose.msra.mxu0 %v295
    %313 = vmatmul.f32.gmra.mxu0 %v293
    %v314 = vpop.f32.mrf.mxu0
    %v315 = vadd.f32 0.0, %v314
    %316 = vdwg.mxu0
    %317 = vrot.lane.b32.xlu0 %v137, 80
    %v318 = vpop.permute.xlu0 %317
    %319 = vrot.lane.b32.xlu0 %v143, 16
    %v320 = vpop.permute.xlu0 %319
    %v321 = vsel %vm151, %v318, 0
    %v323 = vsel %vm151, %v320, 0
    %325 = vmatpush.xpose.msra.mxu0 0.0
    %326 = vmatpush.xpose.msra.mxu0 0.0
    %327 = vmatpush.xpose.msra.mxu0 0.0
    %328 = vmatpush.xpose.msra.mxu0 0.0
    %329 = vmatpush.xpose.msra.mxu0 0.0
    %330 = vmatpush.xpose.msra.mxu0 0.0
    %331 = vmatpush.xpose.msra.mxu0 0.0
    %332 = vmatpush.xpose.msra.mxu0 0.0
    %333 = vmatpush.xpose.msra.mxu0 0.0
    %334 = vmatpush.xpose.msra.mxu0 0.0
    %335 = vmatpush.xpose.msra.mxu0 0.0
    %336 = vmatpush.xpose.msra.mxu0 0.0
    %337 = vmatpush.xpose.msra.mxu0 0.0
    %338 = vmatpush.xpose.msra.mxu0 0.0
    %339 = vmatpush.xpose.msra.mxu0 0.0
    %340 = vmatpush.xpose.msra.mxu0 %v323
    %341 = vmatmul.f32.gmra.mxu0 %v321
    %v342 = vpop.f32.mrf.mxu0
    %v343 = vadd.f32 0.0, %v342
    %344 = vdwg.mxu0
    %345 = vrot.lane.b32.xlu0 %v140, 80
    %v346 = vpop.permute.xlu0 %345
    %347 = vrot.lane.b32.xlu0 %v146, 16
    %v348 = vpop.permute.xlu0 %347
    %v349 = vsel %vm151, %v346, 0
    %v351 = vsel %vm151, %v348, 0
    %353 = vmatpush.xpose.msra.mxu0 0.0
    %354 = vmatpush.xpose.msra.mxu0 0.0
    %355 = vmatpush.xpose.msra.mxu0 0.0
    %356 = vmatpush.xpose.msra.mxu0 0.0
    %357 = vmatpush.xpose.msra.mxu0 0.0
    %358 = vmatpush.xpose.msra.mxu0 0.0
    %359 = vmatpush.xpose.msra.mxu0 0.0
    %360 = vmatpush.xpose.msra.mxu0 0.0
    %361 = vmatpush.xpose.msra.mxu0 0.0
    %362 = vmatpush.xpose.msra.mxu0 0.0
    %363 = vmatpush.xpose.msra.mxu0 0.0
    %364 = vmatpush.xpose.msra.mxu0 0.0
    %365 = vmatpush.xpose.msra.mxu0 0.0
    %366 = vmatpush.xpose.msra.mxu0 0.0
    %367 = vmatpush.xpose.msra.mxu0 0.0
    %368 = vmatpush.xpose.msra.mxu0 %v351
    %369 = vmatmul.f32.gmra.mxu0 %v349
    %v370 = vpop.f32.mrf.mxu0
    %v371 = vadd.f32 0.0, %v370
    %372 = vdwg.mxu0
    %vm373 = vcmask 64512
    %v374 = vsel %vm373, %v175, -inf
    %375 = vmax.xlane.f32.xlu0 %v374
    %v376 = vpop.xlane.xlu0 %375
    %v377 = vsel %vm373, %v203, -inf
    %378 = vmax.xlane.f32.xlu0 %v377
    %v379 = vpop.xlane.xlu0 %378
    %v380 = vsel %vm373, %v231, -inf
    %381 = vmax.xlane.f32.xlu0 %v380
    %v382 = vpop.xlane.xlu0 %381
    %v383 = vsel %vm373, %v259, -inf
    %384 = vmax.xlane.f32.xlu0 %v383
    %v385 = vpop.xlane.xlu0 %384
    %v386 = vsel %vm373, %v287, -inf
    %387 = vmax.xlane.f32.xlu0 %v386
    %v388 = vpop.xlane.xlu0 %387
    %v389 = vsel %vm373, %v315, -inf
    %390 = vmax.xlane.f32.xlu0 %v389
    %v391 = vpop.xlane.xlu0 %390
    %v392 = vsel %vm373, %v343, -inf
    %393 = vmax.xlane.f32.xlu0 %v392
    %v394 = vpop.xlane.xlu0 %393
    %v395 = vsel %vm373, %v371, -inf
    %396 = vmax.xlane.f32.xlu0 %v395
    %v397 = vpop.xlane.xlu0 %396
    %v398 = vsub.f32 %v175, %v376
    %v399 = vsub.f32 %v203, %v379
    %v400 = vsub.f32 %v231, %v382
    %v401 = vsub.f32 %v259, %v385
    %v402 = vsub.f32 %v287, %v388
    %v403 = vsub.f32 %v315, %v391
    %v404 = vsub.f32 %v343, %v394
    %v405 = vsub.f32 %v371, %v397
    %v406 = vmul.f32 %v398, 1.442695
    %v407 = vpow.pop %v406
    %v408 = vmul.f32 %v399, 1.442695
    %v409 = vpow.pop %v408
    %v410 = vmul.f32 %v400, 1.442695
    %v411 = vpow.pop %v410
    %v412 = vmul.f32 %v401, 1.442695
    %v413 = vpow.pop %v412
    %v414 = vmul.f32 %v402, 1.442695
    %v415 = vpow.pop %v414
    %v416 = vmul.f32 %v403, 1.442695
    %v417 = vpow.pop %v416
    %v418 = vmul.f32 %v404, 1.442695
    %v419 = vpow.pop %v418
    %v420 = vmul.f32 %v405, 1.442695
    %v421 = vpow.pop %v420
    %v422 = vsel %vm373, %v407, 0.0
    %423 = vadd.xlane.f32.xlu0 %v422
    %v424 = vpop.xlane.xlu0 %423
    %v425 = vsel %vm373, %v409, 0.0
    %426 = vadd.xlane.f32.xlu0 %v425
    %v427 = vpop.xlane.xlu0 %426
    %v428 = vsel %vm373, %v411, 0.0
    %429 = vadd.xlane.f32.xlu0 %v428
    %v430 = vpop.xlane.xlu0 %429
    %v431 = vsel %vm373, %v413, 0.0
    %432 = vadd.xlane.f32.xlu0 %v431
    %v433 = vpop.xlane.xlu0 %432
    %v434 = vsel %vm373, %v415, 0.0
    %435 = vadd.xlane.f32.xlu0 %v434
    %v436 = vpop.xlane.xlu0 %435
    %v437 = vsel %vm373, %v417, 0.0
    %438 = vadd.xlane.f32.xlu0 %v437
    %v439 = vpop.xlane.xlu0 %438
    %v440 = vsel %vm373, %v419, 0.0
    %441 = vadd.xlane.f32.xlu0 %v440
    %v442 = vpop.xlane.xlu0 %441
    %v443 = vsel %vm373, %v421, 0.0
    %444 = vadd.xlane.f32.xlu0 %v443
    %v445 = vpop.xlane.xlu0 %444
    %v446 = vrcp.pop %v424
    %v447 = vmul.f32 %v424, %v446
    %v448 = vsub.f32 1.0, %v447
    %v449 = vmul.f32 %v446, %v448
    %v450 = vadd.f32 %v446, %v449
    %vm451 = vweird.f32 %v424
    %vm452 = vweird.f32 %v446
    %vm453 = vmor %vm451, %vm452
    %v454 = vsel %vm453, %v446, %v450
    %v455 = vand.u32 2147483647, %v424
    %vm456 = vcmp.eq.f32.partialorder %v455, 8.507059e+37
    %v457 = vand.u32 %v424, 2147483648
    %v458 = vor.u32 1.1754944e-38, %v457
    %v459 = vsel %vm456, %v458, %v454
    %v460 = vrcp.pop %v427
    %v461 = vmul.f32 %v427, %v460
    %v462 = vsub.f32 1.0, %v461
    %v463 = vmul.f32 %v460, %v462
    %v464 = vadd.f32 %v460, %v463
    %vm465 = vweird.f32 %v427
    %vm466 = vweird.f32 %v460
    %vm467 = vmor %vm465, %vm466
    %v468 = vsel %vm467, %v460, %v464
    %v469 = vand.u32 2147483647, %v427
    %vm470 = vcmp.eq.f32.partialorder %v469, 8.507059e+37
    %v471 = vand.u32 %v427, 2147483648
    %v472 = vor.u32 1.1754944e-38, %v471
    %v473 = vsel %vm470, %v472, %v468
    %v474 = vrcp.pop %v430
    %v475 = vmul.f32 %v430, %v474
    %v476 = vsub.f32 1.0, %v475
    %v477 = vmul.f32 %v474, %v476
    %v478 = vadd.f32 %v474, %v477
    %vm479 = vweird.f32 %v430
    %vm480 = vweird.f32 %v474
    %vm481 = vmor %vm479, %vm480
    %v482 = vsel %vm481, %v474, %v478
    %v483 = vand.u32 2147483647, %v430
    %vm484 = vcmp.eq.f32.partialorder %v483, 8.507059e+37
    %v485 = vand.u32 %v430, 2147483648
    %v486 = vor.u32 1.1754944e-38, %v485
    %v487 = vsel %vm484, %v486, %v482
    %v488 = vrcp.pop %v433
    %v489 = vmul.f32 %v433, %v488
    %v490 = vsub.f32 1.0, %v489
    %v491 = vmul.f32 %v488, %v490
    %v492 = vadd.f32 %v488, %v491
    %vm493 = vweird.f32 %v433
    %vm494 = vweird.f32 %v488
    %vm495 = vmor %vm493, %vm494
    %v496 = vsel %vm495, %v488, %v492
    %v497 = vand.u32 2147483647, %v433
    %vm498 = vcmp.eq.f32.partialorder %v497, 8.507059e+37
    %v499 = vand.u32 %v433, 2147483648
    %v500 = vor.u32 1.1754944e-38, %v499
    %v501 = vsel %vm498, %v500, %v496
    %v502 = vrcp.pop %v436
    %v503 = vmul.f32 %v436, %v502
    %v504 = vsub.f32 1.0, %v503
    %v505 = vmul.f32 %v502, %v504
    %v506 = vadd.f32 %v502, %v505
    %vm507 = vweird.f32 %v436
    %vm508 = vweird.f32 %v502
    %vm509 = vmor %vm507, %vm508
    %v510 = vsel %vm509, %v502, %v506
    %v511 = vand.u32 2147483647, %v436
    %vm512 = vcmp.eq.f32.partialorder %v511, 8.507059e+37
    %v513 = vand.u32 %v436, 2147483648
    %v514 = vor.u32 1.1754944e-38, %v513
    %v515 = vsel %vm512, %v514, %v510
    %v516 = vrcp.pop %v439
    %v517 = vmul.f32 %v439, %v516
    %v518 = vsub.f32 1.0, %v517
    %v519 = vmul.f32 %v516, %v518
    %v520 = vadd.f32 %v516, %v519
    %vm521 = vweird.f32 %v439
    %vm522 = vweird.f32 %v516
    %vm523 = vmor %vm521, %vm522
    %v524 = vsel %vm523, %v516, %v520
    %v525 = vand.u32 2147483647, %v439
    %vm526 = vcmp.eq.f32.partialorder %v525, 8.507059e+37
    %v527 = vand.u32 %v439, 2147483648
    %v528 = vor.u32 1.1754944e-38, %v527
    %v529 = vsel %vm526, %v528, %v524
    %v530 = vrcp.pop %v442
    %v531 = vmul.f32 %v442, %v530
    %v532 = vsub.f32 1.0, %v531
    %v533 = vmul.f32 %v530, %v532
    %v534 = vadd.f32 %v530, %v533
    %vm535 = vweird.f32 %v442
    %vm536 = vweird.f32 %v530
    %vm537 = vmor %vm535, %vm536
    %v538 = vsel %vm537, %v530, %v534
    %v539 = vand.u32 2147483647, %v442
    %vm540 = vcmp.eq.f32.partialorder %v539, 8.507059e+37
    %v541 = vand.u32 %v442, 2147483648
    %v542 = vor.u32 1.1754944e-38, %v541
    %v543 = vsel %vm540, %v542, %v538
    %v544 = vrcp.pop %v445
    %v545 = vmul.f32 %v445, %v544
    %v546 = vsub.f32 1.0, %v545
    %v547 = vmul.f32 %v544, %v546
    %v548 = vadd.f32 %v544, %v547
    %vm549 = vweird.f32 %v445
    %vm550 = vweird.f32 %v544
    %vm551 = vmor %vm549, %vm550
    %v552 = vsel %vm551, %v544, %v548
    %v553 = vand.u32 2147483647, %v445
    %vm554 = vcmp.eq.f32.partialorder %v553, 8.507059e+37
    %v555 = vand.u32 %v445, 2147483648
    %v556 = vor.u32 1.1754944e-38, %v555
    %v557 = vsel %vm554, %v556, %v552
    %v558 = vmul.f32 %v407, %v459
    %v559 = vmul.f32 %v409, %v473
    %v560 = vmul.f32 %v411, %v487
    %v561 = vmul.f32 %v413, %v501
    %v562 = vmul.f32 %v415, %v515
    %v563 = vmul.f32 %v417, %v529
    %v564 = vmul.f32 %v419, %v543
    %v565 = vmul.f32 %v421, %v557
    %v566 = vperm.slane %v101, 0
    %v567 = vadd.f32 %v97, %v566
    %v568 = vadd.f32 %v98, %v566
    %v571 = vsel %vm373, %v558, 0
    %573 = vmatpush.msra.mxu0 0.0
    %574 = vmatpush.msra.mxu0 0.0
    %575 = vmatpush.msra.mxu0 0.0
    %576 = vmatpush.msra.mxu0 0.0
    %577 = vmatpush.msra.mxu0 0.0
    %578 = vmatpush.msra.mxu0 0.0
    %579 = vmatpush.msra.mxu0 0.0
    %580 = vmatpush.msra.mxu0 0.0
    %581 = vmatpush.msra.mxu0 0.0
    %582 = vmatpush.msra.mxu0 0.0
    %583 = vmatpush.msra.mxu0 0.0
    %584 = vmatpush.msra.mxu0 0.0
    %585 = vmatpush.msra.mxu0 0.0
    %586 = vmatpush.msra.mxu0 0.0
    %587 = vmatpush.msra.mxu0 0.0
    %588 = vmatpush.msra.mxu0 %v150
    %589 = vmatmul.f32.gmra.mxu0 %v571
    %v590 = vpop.f32.mrf.mxu0
    %v591 = vadd.f32 0.0, %v590
    %592 = vdwg.mxu0
    %v595 = vsel %vm373, %v559, 0
    %597 = vmatpush.msra.mxu0 0.0
    %598 = vmatpush.msra.mxu0 0.0
    %599 = vmatpush.msra.mxu0 0.0
    %600 = vmatpush.msra.mxu0 0.0
    %601 = vmatpush.msra.mxu0 0.0
    %602 = vmatpush.msra.mxu0 0.0
    %603 = vmatpush.msra.mxu0 0.0
    %604 = vmatpush.msra.mxu0 0.0
    %605 = vmatpush.msra.mxu0 0.0
    %606 = vmatpush.msra.mxu0 0.0
    %607 = vmatpush.msra.mxu0 0.0
    %608 = vmatpush.msra.mxu0 0.0
    %609 = vmatpush.msra.mxu0 0.0
    %610 = vmatpush.msra.mxu0 0.0
    %611 = vmatpush.msra.mxu0 0.0
    %612 = vmatpush.msra.mxu0 %v179
    %613 = vmatmul.f32.gmra.mxu0 %v595
    %v614 = vpop.f32.mrf.mxu0
    %v615 = vadd.f32 0.0, %v614
    %616 = vdwg.mxu0
    %v617 = vld [vmem:[#allocation8] sm:$0xff]
    %v618 = vld [vmem:[#allocation8 + $0x8] sm:$0xff]
    %v620 = vsel %vm151, %v591, 0
    %v623 = vsel %vm151, %v615, 0
    %625 = vmatpush.msra.mxu0 0.0
    %626 = vmatpush.msra.mxu0 0.0
    %627 = vmatpush.msra.mxu0 0.0
    %628 = vmatpush.msra.mxu0 0.0
    %629 = vmatpush.msra.mxu0 0.0
    %630 = vmatpush.msra.mxu0 0.0
    %631 = vmatpush.msra.mxu0 0.0
    %632 = vmatpush.msra.mxu0 0.0
    %633 = vmatpush.msra.mxu0 0.0
    %634 = vmatpush.msra.mxu0 0.0
    %635 = vmatpush.msra.mxu0 0.0
    %636 = vmatpush.msra.mxu0 0.0
    %637 = vmatpush.msra.mxu0 0.0
    %638 = vmatpush.msra.mxu0 0.0
    %639 = vmatpush.msra.mxu0 %v618
    %640 = vmatpush.msra.mxu0 %v617
    %641 = vmatmul.f32.gmra.mxu0 %v620
    %v642 = vpop.f32.mrf.mxu0
    %v643 = vadd.f32 0.0, %v642
    %644 = vmatmul.f32.gmra.mxu0 %v623
    %v645 = vpop.f32.mrf.mxu0
    %v646 = vadd.f32 0.0, %v645
    %647 = vdwg.mxu0
    %v648 = vadd.f32 %v567, %v643
    %v649 = vadd.f32 %v568, %v646
    %v652 = vsel %vm373, %v560, 0
    %654 = vmatpush.msra.mxu0 0.0
    %655 = vmatpush.msra.mxu0 0.0
    %656 = vmatpush.msra.mxu0 0.0
    %657 = vmatpush.msra.mxu0 0.0
    %658 = vmatpush.msra.mxu0 0.0
    %659 = vmatpush.msra.mxu0 0.0
    %660 = vmatpush.msra.mxu0 0.0
    %661 = vmatpush.msra.mxu0 0.0
    %662 = vmatpush.msra.mxu0 0.0
    %663 = vmatpush.msra.mxu0 0.0
    %664 = vmatpush.msra.mxu0 0.0
    %665 = vmatpush.msra.mxu0 0.0
    %666 = vmatpush.msra.mxu0 0.0
    %667 = vmatpush.msra.mxu0 0.0
    %668 = vmatpush.msra.mxu0 0.0
    %669 = vmatpush.msra.mxu0 %v208
    %670 = vmatmul.f32.gmra.mxu0 %v652
    %v671 = vpop.f32.mrf.mxu0
    %v672 = vadd.f32 0.0, %v671
    %673 = vdwg.mxu0
    %v676 = vsel %vm373, %v561, 0
    %678 = vmatpush.msra.mxu0 0.0
    %679 = vmatpush.msra.mxu0 0.0
    %680 = vmatpush.msra.mxu0 0.0
    %681 = vmatpush.msra.mxu0 0.0
    %682 = vmatpush.msra.mxu0 0.0
    %683 = vmatpush.msra.mxu0 0.0
    %684 = vmatpush.msra.mxu0 0.0
    %685 = vmatpush.msra.mxu0 0.0
    %686 = vmatpush.msra.mxu0 0.0
    %687 = vmatpush.msra.mxu0 0.0
    %688 = vmatpush.msra.mxu0 0.0
    %689 = vmatpush.msra.mxu0 0.0
    %690 = vmatpush.msra.mxu0 0.0
    %691 = vmatpush.msra.mxu0 0.0
    %692 = vmatpush.msra.mxu0 0.0
    %693 = vmatpush.msra.mxu0 %v236
    %694 = vmatmul.f32.gmra.mxu0 %v676
    %v695 = vpop.f32.mrf.mxu0
    %v696 = vadd.f32 0.0, %v695
    %697 = vdwg.mxu0
    %s698 = scalar_lea.vmem [#allocation8], 16
    %v699 = vld [vmem:[%s698] sm:$0xff]
    %v700 = vld [vmem:[%s698 + $0x8] sm:$0xff]
    %v702 = vsel %vm151, %v672, 0
    %v705 = vsel %vm151, %v696, 0
    %707 = vmatpush.msra.mxu0 0.0
    %708 = vmatpush.msra.mxu0 0.0
    %709 = vmatpush.msra.mxu0 0.0
    %710 = vmatpush.msra.mxu0 0.0
    %711 = vmatpush.msra.mxu0 0.0
    %712 = vmatpush.msra.mxu0 0.0
    %713 = vmatpush.msra.mxu0 0.0
    %714 = vmatpush.msra.mxu0 0.0
    %715 = vmatpush.msra.mxu0 0.0
    %716 = vmatpush.msra.mxu0 0.0
    %717 = vmatpush.msra.mxu0 0.0
    %718 = vmatpush.msra.mxu0 0.0
    %719 = vmatpush.msra.mxu0 0.0
    %720 = vmatpush.msra.mxu0 0.0
    %721 = vmatpush.msra.mxu0 %v700
    %722 = vmatpush.msra.mxu0 %v699
    %723 = vmatmul.f32.gmra.mxu0 %v702
    %v724 = vpop.f32.mrf.mxu0
    %v725 = vadd.f32 0.0, %v724
    %726 = vmatmul.f32.gmra.mxu0 %v705
    %v727 = vpop.f32.mrf.mxu0
    %v728 = vadd.f32 0.0, %v727
    %729 = vdwg.mxu0
    %v730 = vadd.f32 %v648, %v725
    %v731 = vadd.f32 %v649, %v728
    %v734 = vsel %vm373, %v562, 0
    %736 = vmatpush.msra.mxu0 0.0
    %737 = vmatpush.msra.mxu0 0.0
    %738 = vmatpush.msra.mxu0 0.0
    %739 = vmatpush.msra.mxu0 0.0
    %740 = vmatpush.msra.mxu0 0.0
    %741 = vmatpush.msra.mxu0 0.0
    %742 = vmatpush.msra.mxu0 0.0
    %743 = vmatpush.msra.mxu0 0.0
    %744 = vmatpush.msra.mxu0 0.0
    %745 = vmatpush.msra.mxu0 0.0
    %746 = vmatpush.msra.mxu0 0.0
    %747 = vmatpush.msra.mxu0 0.0
    %748 = vmatpush.msra.mxu0 0.0
    %749 = vmatpush.msra.mxu0 0.0
    %750 = vmatpush.msra.mxu0 0.0
    %751 = vmatpush.msra.mxu0 %v264
    %752 = vmatmul.f32.gmra.mxu0 %v734
    %v753 = vpop.f32.mrf.mxu0
    %v754 = vadd.f32 0.0, %v753
    %755 = vdwg.mxu0
    %v758 = vsel %vm373, %v563, 0
    %760 = vmatpush.msra.mxu0 0.0
    %761 = vmatpush.msra.mxu0 0.0
    %762 = vmatpush.msra.mxu0 0.0
    %763 = vmatpush.msra.mxu0 0.0
    %764 = vmatpush.msra.mxu0 0.0
    %765 = vmatpush.msra.mxu0 0.0
    %766 = vmatpush.msra.mxu0 0.0
    %767 = vmatpush.msra.mxu0 0.0
    %768 = vmatpush.msra.mxu0 0.0
    %769 = vmatpush.msra.mxu0 0.0
    %770 = vmatpush.msra.mxu0 0.0
    %771 = vmatpush.msra.mxu0 0.0
    %772 = vmatpush.msra.mxu0 0.0
    %773 = vmatpush.msra.mxu0 0.0
    %774 = vmatpush.msra.mxu0 0.0
    %775 = vmatpush.msra.mxu0 %v292
    %776 = vmatmul.f32.gmra.mxu0 %v758
    %v777 = vpop.f32.mrf.mxu0
    %v778 = vadd.f32 0.0, %v777
    %779 = vdwg.mxu0
    %s780 = scalar_lea.vmem [#allocation8], 32
    %v781 = vld [vmem:[%s780] sm:$0xff]
    %v782 = vld [vmem:[%s780 + $0x8] sm:$0xff]
    %v784 = vsel %vm151, %v754, 0
    %v787 = vsel %vm151, %v778, 0
    %789 = vmatpush.msra.mxu0 0.0
    %790 = vmatpush.msra.mxu0 0.0
    %791 = vmatpush.msra.mxu0 0.0
    %792 = vmatpush.msra.mxu0 0.0
    %793 = vmatpush.msra.mxu0 0.0
    %794 = vmatpush.msra.mxu0 0.0
    %795 = vmatpush.msra.mxu0 0.0
    %796 = vmatpush.msra.mxu0 0.0
    %797 = vmatpush.msra.mxu0 0.0
    %798 = vmatpush.msra.mxu0 0.0
    %799 = vmatpush.msra.mxu0 0.0
    %800 = vmatpush.msra.mxu0 0.0
    %801 = vmatpush.msra.mxu0 0.0
    %802 = vmatpush.msra.mxu0 0.0
    %803 = vmatpush.msra.mxu0 %v782
    %804 = vmatpush.msra.mxu0 %v781
    %805 = vmatmul.f32.gmra.mxu0 %v784
    %v806 = vpop.f32.mrf.mxu0
    %v807 = vadd.f32 0.0, %v806
    %808 = vmatmul.f32.gmra.mxu0 %v787
    %v809 = vpop.f32.mrf.mxu0
    %v810 = vadd.f32 0.0, %v809
    %811 = vdwg.mxu0
    %v812 = vadd.f32 %v730, %v807
    %v813 = vadd.f32 %v731, %v810
    %v816 = vsel %vm373, %v564, 0
    %818 = vmatpush.msra.mxu0 0.0
    %819 = vmatpush.msra.mxu0 0.0
    %820 = vmatpush.msra.mxu0 0.0
    %821 = vmatpush.msra.mxu0 0.0
    %822 = vmatpush.msra.mxu0 0.0
    %823 = vmatpush.msra.mxu0 0.0
    %824 = vmatpush.msra.mxu0 0.0
    %825 = vmatpush.msra.mxu0 0.0
    %826 = vmatpush.msra.mxu0 0.0
    %827 = vmatpush.msra.mxu0 0.0
    %828 = vmatpush.msra.mxu0 0.0
    %829 = vmatpush.msra.mxu0 0.0
    %830 = vmatpush.msra.mxu0 0.0
    %831 = vmatpush.msra.mxu0 0.0
    %832 = vmatpush.msra.mxu0 0.0
    %833 = vmatpush.msra.mxu0 %v320
    %834 = vmatmul.f32.gmra.mxu0 %v816
    %v835 = vpop.f32.mrf.mxu0
    %v836 = vadd.f32 0.0, %v835
    %837 = vdwg.mxu0
    %v840 = vsel %vm373, %v565, 0
    %842 = vmatpush.msra.mxu0 0.0
    %843 = vmatpush.msra.mxu0 0.0
    %844 = vmatpush.msra.mxu0 0.0
    %845 = vmatpush.msra.mxu0 0.0
    %846 = vmatpush.msra.mxu0 0.0
    %847 = vmatpush.msra.mxu0 0.0
    %848 = vmatpush.msra.mxu0 0.0
    %849 = vmatpush.msra.mxu0 0.0
    %850 = vmatpush.msra.mxu0 0.0
    %851 = vmatpush.msra.mxu0 0.0
    %852 = vmatpush.msra.mxu0 0.0
    %853 = vmatpush.msra.mxu0 0.0
    %854 = vmatpush.msra.mxu0 0.0
    %855 = vmatpush.msra.mxu0 0.0
    %856 = vmatpush.msra.mxu0 0.0
    %857 = vmatpush.msra.mxu0 %v348
    %858 = vmatmul.f32.gmra.mxu0 %v840
    %v859 = vpop.f32.mrf.mxu0
    %v860 = vadd.f32 0.0, %v859
    %861 = vdwg.mxu0
    %s862 = scalar_lea.vmem [#allocation8], 48
    %v863 = vld [vmem:[%s862] sm:$0xff]
    %v864 = vld [vmem:[%s862 + $0x8] sm:$0xff]
    %v866 = vsel %vm151, %v836, 0
    %v869 = vsel %vm151, %v860, 0
    %871 = vmatpush.msra.mxu0 0.0
    %872 = vmatpush.msra.mxu0 0.0
    %873 = vmatpush.msra.mxu0 0.0
    %874 = vmatpush.msra.mxu0 0.0
    %875 = vmatpush.msra.mxu0 0.0
    %876 = vmatpush.msra.mxu0 0.0
    %877 = vmatpush.msra.mxu0 0.0
    %878 = vmatpush.msra.mxu0 0.0
    %879 = vmatpush.msra.mxu0 0.0
    %880 = vmatpush.msra.mxu0 0.0
    %881 = vmatpush.msra.mxu0 0.0
    %882 = vmatpush.msra.mxu0 0.0
    %883 = vmatpush.msra.mxu0 0.0
    %884 = vmatpush.msra.mxu0 0.0
    %885 = vmatpush.msra.mxu0 %v864
    %886 = vmatpush.msra.mxu0 %v863
    %887 = vmatmul.f32.gmra.mxu0 %v866
    %v888 = vpop.f32.mrf.mxu0
    %v889 = vadd.f32 0.0, %v888
    %890 = vmatmul.f32.gmra.mxu0 %v869
    %v891 = vpop.f32.mrf.mxu0
    %v892 = vadd.f32 0.0, %v891
    %893 = vdwg.mxu0
    %v894 = vadd.f32 %v812, %v889
    %v895 = vadd.f32 %v813, %v892
    %v896 = vsel %vm106, %v894, 0.0
    %897 = vadd.xlane.f32.xlu0 %v896
    %v898 = vpop.xlane.xlu0 %897
    %v899 = vsel %vm106, %v895, 0.0
    %900 = vadd.xlane.f32.xlu0 %v899
    %v901 = vpop.xlane.xlu0 %900
    %v902 = vrcp.pop 32.0
    %v903 = vmul.f32 32.0, %v902
    %v904 = vsub.f32 1.0, %v903
    %v905 = vmul.f32 %v902, %v904
    %v906 = vadd.f32 %v902, %v905
    %vm907 = vweird.f32 %v902
    %v908 = vsel %vm907, %v902, %v906
    %v909 = vmul.f32 %v898, %v908
    %v910 = vmul.f32 %v901, %v908
    %v911 = vsub.f32 %v894, %v909
    %v912 = vsub.f32 %v895, %v910
    %v913 = vmul.f32 %v911, %v911
    %v914 = vmul.f32 %v912, %v912
    %v915 = vsel %vm106, %v913, 0.0
    %916 = vadd.xlane.f32.xlu0 %v915
    %v917 = vpop.xlane.xlu0 %916
    %v918 = vsel %vm106, %v914, 0.0
    %919 = vadd.xlane.f32.xlu0 %v918
    %v920 = vpop.xlane.xlu0 %919
    %v921 = vmul.f32 %v917, %v908
    %v922 = vmul.f32 %v920, %v908
    %v923 = vadd.f32 %v921, 1e-12
    %v924 = vadd.f32 %v922, 1e-12
    %v925 = vrsqrt.pop %v923
    %v926 = vmul.f32 %v925, %v923
    %v927 = vmul.f32 %v926, %v925
    %v928 = vmul.f32 0.5, %v927
    %v929 = vsub.f32 1.5, %v928
    %v930 = vmul.f32 %v925, %v929
    %vm931 = vweird.f32 %v923
    %vm932 = vweird.f32 %v925
    %vm933 = vmor %vm931, %vm932
    %v934 = vsel %vm933, %v925, %v930
    %v935 = vrsqrt.pop %v924
    %v936 = vmul.f32 %v935, %v924
    %v937 = vmul.f32 %v936, %v935
    %v938 = vmul.f32 0.5, %v937
    %v939 = vsub.f32 1.5, %v938
    %v940 = vmul.f32 %v935, %v939
    %vm941 = vweird.f32 %v924
    %vm942 = vweird.f32 %v935
    %vm943 = vmor %vm941, %vm942
    %v944 = vsel %vm943, %v935, %v940
    %v945 = vmul.f32 %v911, %v934
    %v946 = vmul.f32 %v912, %v944
    %v947 = vperm.slane %v101, 1
    %v948 = vmul.f32 %v945, %v947
    %v949 = vmul.f32 %v946, %v947
    %v950 = vperm.slane %v101, 2
    %v951 = vadd.f32 %v948, %v950
    %v952 = vadd.f32 %v949, %v950
    %953 = vst.msk [vmem:[#allocation11] sm:$0xff] %vm106, %v951
    %954 = vst.msk [vmem:[#allocation11 + $0x8] sm:$0xff] %vm106, %v952
    // Predicated region
    $region42: #{tpu_custom_call.1} parent=1 // pred_check
      _
    $region43: #{tpu_custom_call.1} parent=1 // pred_check_branch
      %956 = sbr.rel (0) target = $region45
    $region44: #{tpu_custom_call.1} parent=1 // pred_region
      %958 = vsyncadd [#allocation4], 0
      %s959 = sshll.u32 [#allocation11], 4
      %s960 = int_to_ptr.vmem [resolvable:$true] %s959
      %s961 = sshll.u32 %s5, 4
      %s962 = int_to_ptr.hbm [resolvable:$true] %s961
      %967 = dma.vmem_to_hbm [thread:$0]  %s960, 256, %s962, [#allocation4], 128, 128, 8
    $region45: #{tpu_custom_call.1} parent=1 // pred_fallthru
      _
    // Predicated region
    $region46: #{tpu_custom_call.1} parent=1 // pred_check
      _
    $region47: #{tpu_custom_call.1} parent=1 // pred_check_branch
      %969 = sbr.rel (0) target = $region49
    $region48: #{tpu_custom_call.1} parent=1 // pred_region
      %971 = dma.done [#allocation4], 256
    $region49: #{tpu_custom_call.1} parent=1 // pred_fallthru
      _
    %972 = vsyncpa [#allocation3], 1
    %973 = vsyncpa [#allocation6], 1
    %974 = vsyncpa [#allocation9], 1
    %975 = vsyncpa [#allocation4], 1

</llo_original>
